<compile_context>
chip_gen: v6e
topology: v6e:2x2x1
jax: 0.10.0
libtpu: 0.0.40
codegen_flags: <defaults>
</compile_context>

<pallas_src>
import random

import numpy as np
import jax
import jax.numpy as jnp
from jax.experimental import pallas as pl
from jax.experimental.pallas import tpu as pltpu


def _round_up(x: int, m: int) -> int:
    return ((x + m - 1) // m) * m


def _round_down(x: int, m: int) -> int:
    return (x // m) * m


def _ceil_div(a: int, b: int) -> int:
    return -(-a // b)


# -----------------------------------------------------------------------------
# TPU generation / VMEM capacity (trace-time, host side).
# -----------------------------------------------------------------------------
def _tpu_generation() -> str:
    kind = ""
    try:
        kind = jax.devices()[0].device_kind.lower()
    except Exception:
        pass
    if "v5 lite" in kind or "v5lite" in kind or "v5e" in kind:
        return "v5e"
    if "v6" in kind or "trillium" in kind:
        return "v6e"
    if "v7" in kind:
        return "v7x"
    return "other"


def _vmem_capacity_bytes(gen: str) -> int:
    try:
        cap = int(pltpu.get_tpu_info().vmem_capacity_bytes)
        if cap > 0:
            return cap
    except Exception:
        pass
    # Conservative fallbacks: 128 MiB on v5e/v6e, 64 MiB otherwise (v7x-safe).
    return {"v5e": 128 << 20, "v6e": 128 << 20}.get(gen, 64 << 20)


# -----------------------------------------------------------------------------
# Lanczos-3 resampling weights (PIL / torchvision-antialias style), host side.
# -----------------------------------------------------------------------------
def _lanczos(x, a=3.0):
    x = np.asarray(x, dtype=np.float64)
    return np.where(np.abs(x) < a, np.sinc(x) * np.sinc(x / a), 0.0)


def _resize_weights(in_size: int, out_size: int, a: float = 3.0) -> np.ndarray:
    """Dense (out_size, in_size) Lanczos-3 resampling matrix (antialiased)."""
    W = np.zeros((out_size, in_size), dtype=np.float64)
    scale = in_size / out_size
    filterscale = max(scale, 1.0)          # antialias when downscaling
    support = a * filterscale
    ss = 1.0 / filterscale
    for i in range(out_size):
        center = (i + 0.5) * scale
        xmin = max(int(center - support + 0.5), 0)
        xmax = min(int(center + support + 0.5), in_size)
        js = np.arange(xmin, xmax)
        w = _lanczos((js - center + 0.5) * ss, a)
        s = w.sum()
        if s != 0.0:
            w = w / s
        W[i, xmin:xmax] = w
    return W.astype(np.float32)


def _band_windows(w_full: np.ndarray, tile: int, n_tiles: int, in_size: int,
                  align: int, require_aligned: bool):
    """Per output tile, the aligned input window covering all nonzero weights.

    Returns (starts[n_tiles] int32 | None, band, aligned).  None means "use the
    full input extent" (no banding possible / not worthwhile).
    """
    spans, starts, needs = [], [], []
    for t in range(n_tiles):
        rows = w_full[t * tile:(t + 1) * tile]
        nz = np.nonzero(np.any(rows != 0.0, axis=0))[0]
        s, e = (int(nz[0]), int(nz[-1]) + 1) if nz.size else (0, 1)
        st = _round_down(s, align)
        spans.append((s, e))
        starts.append(st)
        needs.append(e - st)
    band = _round_up(max(needs), align)
    if band >= in_size:
        return None, in_size, True
    aligned = True
    final = []
    for (s, e), st in zip(spans, starts):
        if st + band > in_size:                     # clamp to the input extent
            st = in_size - band
            aligned = aligned and (st % align == 0)
        if not (0 <= st <= s and e <= st + band <= in_size):
            return None, in_size, True              # give up banding, stay exact
        final.append(st)
    if require_aligned and not aligned:
        return None, in_size, True
    return np.asarray(final, np.int32), band, aligned


# -----------------------------------------------------------------------------
# Pallas kernel.  Grid = (N*C, n_h_tiles, n_w_tiles).  Each step produces one
# (th, tw) output tile from a banded window of the VMEM-resident input plane.
# -----------------------------------------------------------------------------
def _make_kernel(*, height_first, band_h, band_w, bh, bw, h_aligned, w_aligned,
                 compute_dtype, out_dtype):
    out_dtype = np.dtype(out_dtype)
    compute_dtype = np.dtype(compute_dtype)
    out_is_int = jnp.issubdtype(out_dtype, jnp.integer)
    if out_is_int:
        info = jnp.iinfo(out_dtype)
        lo, hi = float(info.min), float(info.max)

    def _finalize(acc_f32):
        if out_is_int:
            # Lanczos has negative lobes: saturate like PIL instead of wrapping.
            # (bf16 operands may flip +-1 near .5 boundaries vs f32 reference.)
            acc_f32 = jnp.clip(jnp.round(acc_f32), lo, hi)
        return acc_f32.astype(out_dtype)

    def _cast(v):
        return v if v.dtype == compute_dtype else v.astype(compute_dtype)

    def kernel(hstart_ref, wstart_ref, x_ref, whb_ref, wwtb_ref, o_ref):
        # Banded window of the full (H, W) plane already resident in VMEM.
        if band_h:
            hs = hstart_ref[pl.program_id(1)]
            if h_aligned:
                hs = pl.multiple_of(hs, 8)
            hsl = pl.ds(hs, bh)
        else:
            hsl = slice(None)
        if band_w:
            ws = wstart_ref[pl.program_id(2)]
            if w_aligned:
                ws = pl.multiple_of(ws, 128)
            wsl = pl.ds(ws, bw)
        else:
            wsl = slice(None)
        xwin = _cast(x_ref[0, hsl, wsl])            # (bh, bw)

        whb = whb_ref[...]                          # (th, bh)
        wwtb = wwtb_ref[...]                        # (bw, tw)
        if height_first:
            tmp = jnp.dot(whb, xwin, preferred_element_type=jnp.float32)
            out = jnp.dot(_cast(tmp), wwtb, preferred_element_type=jnp.float32)
        else:
            tmp = jnp.dot(xwin, wwtb, preferred_element_type=jnp.float32)
            out = jnp.dot(whb, _cast(tmp), preferred_element_type=jnp.float32)
        o_ref[0] = _finalize(out)

    return kernel


def lanczos_resize_nchw(x: jax.Array, h_out: int, w_out: int, *,
                        compute_dtype=None, fast_compute: bool = False,
                        h_tile_max: int | None = None,
                        w_tile: int | None = None) -> jax.Array:
    N, C, H, W = x.shape
    out_dtype = np.dtype(x.dtype)
    gen = _tpu_generation()

    # Compute dtype: f32 input keeps f32 operands (PIL-accurate) unless
    # fast_compute is requested (recommended on v5e: ~3-4x MXU rate, looser
    # tolerance); bf16/f16/integer images use bf16 operands with f32 accum.
    if compute_dtype is None:
        if fast_compute:
            compute_dtype = np.dtype(jnp.bfloat16)
        elif jnp.issubdtype(out_dtype, jnp.floating) and out_dtype.itemsize >= 4:
            compute_dtype = np.dtype(np.float32)
        else:
            compute_dtype = np.dtype(jnp.bfloat16)
    else:
        compute_dtype = np.dtype(compute_dtype)

    # Sublane alignment: 8 for 4-byte, 16 for 2-byte, 32 for 1-byte elements.
    min_item = min(out_dtype.itemsize, compute_dtype.itemsize)
    sub = max(8, 32 // min_item)

    # h_out tiling (bigger tiles on v5e/v6e where VMEM is plentiful).
    if h_tile_max is None:
        h_tile_max = 256 if gen == "v7x" else 512
    h_al = _round_up(h_out, sub)
    if h_al <= h_tile_max:
        th, n_ht = h_al, 1
    else:
        n_ht = _ceil_div(h_al, h_tile_max)
        th = _round_up(_ceil_div(h_al, n_ht), sub)
    h_out_pad = th * n_ht

    # w_out tiling: lane-dense 256-wide tiles (fills the v6e/v7x 256x256 MXU,
    # two clean passes on v5e's 128x128 MXU); 128 for very narrow outputs.
    if w_tile is None:
        w_tile = 128 if w_out <= 128 else 256
    tw = _round_up(min(w_tile, _round_up(w_out, 128)), 128)
    n_wt = _ceil_div(w_out, tw)
    w_out_pad = n_wt * tw

    # Dense (padded) weights, host side.
    wh_full = np.zeros((h_out_pad, H), np.float32)
    wh_full[:h_out] = _resize_weights(H, h_out)
    ww_full = np.zeros((w_out_pad, W), np.float32)
    ww_full[:w_out] = _resize_weights(W, w_out)

    # Band windows (exact: windows cover every nonzero Lanczos tap).
    hstarts, bh, h_aligned = _band_windows(wh_full, th, n_ht, H, 8,
                                           require_aligned=False)
    wstarts, bw, w_aligned = _band_windows(ww_full, tw, n_wt, W, 128,
                                           require_aligned=True)
    band_h = hstarts is not None
    band_w = wstarts is not None
    if not band_h:
        hstarts, bh = np.zeros((n_ht,), np.int32), H
    if not band_w:
        wstarts, bw = np.zeros((n_wt,), np.int32), W

    # Banded, pre-transposed weight slabs (zero-cost at run time).
    if band_h:
        wh_np = np.concatenate([wh_full[t * th:(t + 1) * th, s:s + bh]
                                for t, s in enumerate(hstarts)], axis=0)
    else:
        wh_np = wh_full                                   # (h_out_pad, H)
    wh_spec = pl.BlockSpec((th, bh), lambda i, t, w, hs, ws: (t, 0))

    if band_w:
        wwt_np = np.concatenate([ww_full[w * tw:(w + 1) * tw, s:s + bw].T
                                 for w, s in enumerate(wstarts)], axis=0)
        wwt_spec = pl.BlockSpec((bw, tw), lambda i, t, w, hs, ws: (w, 0))
    else:
        wwt_np = ww_full.T                                # (W, w_out_pad)
        wwt_spec = pl.BlockSpec((W, tw), lambda i, t, w, hs, ws: (0, w))

    wh = jnp.asarray(wh_np, dtype=compute_dtype)
    wwt = jnp.asarray(wwt_np, dtype=compute_dtype)

    # Contraction order by per-step FLOPs.
    flops_hf = th * bw * (bh + tw)
    flops_wf = bh * tw * (bw + th)
    height_first = flops_hf <= flops_wf
    per_step = min(flops_hf, flops_wf)

    NC = N * C
    xf = x.reshape(NC, H, W)

    kernel = _make_kernel(height_first=height_first, band_h=band_h, band_w=band_w,
                          bh=bh, bw=bw, h_aligned=bool(h_aligned),
                          w_aligned=bool(w_aligned),
                          compute_dtype=compute_dtype, out_dtype=out_dtype)

    # Advisory cost estimate for the XLA scheduler.
    cost = pl.CostEstimate(
        flops=int(2 * NC * n_ht * n_wt * per_step), transcendentals=0,
        bytes_accessed=int(NC * (H * W * out_dtype.itemsize
                                 + h_out_pad * w_out_pad * out_dtype.itemsize)
                           + (wh.size + wwt.size) * compute_dtype.itemsize))

    # Sublane-aware VMEM estimate + generation-aware budget (~0.8x physical).
    def blk_bytes(r, c, dt):
        dt = np.dtype(dt)
        s = max(8, 32 // dt.itemsize)
        return _round_up(max(int(r), 1), s) * _round_up(max(int(c), 1), 128) * dt.itemsize

    est = 2 * (blk_bytes(H, W, out_dtype) + blk_bytes(th, bh, compute_dtype)
               + blk_bytes(bw, tw, compute_dtype) + blk_bytes(th, tw, out_dtype))
    est += (blk_bytes(bh, bw, compute_dtype) + blk_bytes(th, bw, np.float32)
            + blk_bytes(bh, tw, np.float32) + 2 * blk_bytes(th, tw, np.float32))
    budget = int(0.8 * _vmem_capacity_bytes(gen))
    vmem_limit = int(min(budget, max(32 << 20, int(1.4 * est))))
    # TODO(synk): if a (directly-called) plane is too big for the budget a
    # column-tiled K-reduction path is needed; RandomDownscale never hits it.

    # Multi-TensorCore sharding: when NC >= 2 only shard the plane axis so each
    # core DMAs a plane exactly once; with a single plane allow h-tile sharding.
    if NC >= 2:
        dim_sem = ("parallel", "arbitrary", "arbitrary")
    else:
        dim_sem = ("parallel", "parallel", "arbitrary")

    out = pl.pallas_call(
        kernel,
        out_shape=jax.ShapeDtypeStruct((NC, h_out_pad, w_out_pad), out_dtype),
        grid_spec=pltpu.PrefetchScalarGridSpec(
            num_scalar_prefetch=2,
            grid=(NC, n_ht, n_wt),
            in_specs=[
                pl.BlockSpec((1, H, W), lambda i, t, w, hs, ws: (i, 0, 0)),  # plane
                wh_spec,                                                      # Wh band
                wwt_spec,                                                     # Ww^T band
            ],
            out_specs=pl.BlockSpec((1, th, tw), lambda i, t, w, hs, ws: (i, t, w)),
        ),
        compiler_params=pltpu.CompilerParams(
            dimension_semantics=dim_sem, vmem_limit_bytes=vmem_limit),
        cost_estimate=cost,
    )(jnp.asarray(hstarts, jnp.int32), jnp.asarray(wstarts, jnp.int32), xf, wh, wwt)

    out = out.reshape(N, C, h_out_pad, w_out_pad)
    return out[:, :, :h_out, :w_out]


# -----------------------------------------------------------------------------
# RandomDownscale forward.  Size selection / RNG stays on the host because it
# changes the output shape (must be static under JAX).  The filter/scale rule
# mirrors the reference PyTorch module exactly.
# -----------------------------------------------------------------------------
def random_downscale(
    x: jax.Array,
    sizes=(640, 720, 960, 1080),
    side: str = "longest",
    py_rng: random.Random | None = None,
    compute_dtype=None,
    fast_compute: bool = False,
) -> jax.Array:
    _, _, height, width = x.shape                     # NCHW
    if side == "width":
        scale_dim = width
    elif side == "height":
        scale_dim = height
    elif side == "shortest":
        scale_dim = min(width, height)
    else:  # 'longest'
        scale_dim = max(width, height)

    valid = [s for s in sizes if s >= scale_dim]
    if len(valid) == 0:
        return x

    rng = py_rng if py_rng is not None else random    # torch uses global random
    chosen = rng.choice(valid)
    scale = scale_dim / chosen
    new_width = int(round(width * scale))
    new_height = int(round(height * scale))
    if new_height == height and new_width == width:
        return x                                      # identity resize: skip kernel
    return lanczos_resize_nchw(x, new_height, new_width,
                               compute_dtype=compute_dtype,
                               fast_compute=fast_compute)


# -----------------------------------------------------------------------------
# Pure-JAX reference (same weight matrices, f32 einsum) for sanity checks.
# -----------------------------------------------------------------------------
def _reference_resize(x, h_out, w_out):
    N, C, H, W = x.shape
    wh = jnp.asarray(_resize_weights(H, h_out), jnp.float32)
    ww = jnp.asarray(_resize_weights(W, w_out), jnp.float32)
    return jnp.einsum("oh,nchw,pw->ncop", wh, x.astype(jnp.float32), ww,
                      precision=jax.lax.Precision.HIGHEST)


if __name__ == "__main__":
    key = jax.random.PRNGKey(0)
    k1, k2 = jax.random.split(key)

    # ---- tiny f32 path (single tile, band windows degenerate to full dims) --
    x = jax.random.normal(k1, (2, 3, 32, 32), dtype=jnp.float32)
    sizes = (48, 64)
    out = random_downscale(x, sizes=sizes, side="longest", py_rng=random.Random(0))
    out = jax.block_until_ready(out)

    chosen = random.Random(0).choice([s for s in sizes if s >= 32])
    scale = 32 / chosen
    new_h = int(round(32 * scale))
    new_w = int(round(32 * scale))
    ref = jax.block_until_ready(_reference_resize(x, new_h, new_w))

    assert out.shape == (2, 3, new_h, new_w), out.shape
    np.testing.assert_allclose(np.asarray(out, dtype=np.float32), np.asarray(ref),
                               rtol=1e-4, atol=1e-4)

    # ---- bf16 operand path (f32 accumulation) --------------------------------
    out_bf = jax.block_until_ready(lanczos_resize_nchw(x.astype(jnp.bfloat16),
                                                       new_h, new_w))
    np.testing.assert_allclose(np.asarray(out_bf.astype(jnp.float32)),
                               np.asarray(ref), rtol=6e-2, atol=6e-2)

    # ---- banded + tiled path: n_ht >= 2, n_wt = 2, active H/W band windows ---
    x2 = jax.random.normal(k2, (1, 2, 768, 640), dtype=jnp.float32)
    out2 = jax.block_until_ready(lanczos_resize_nchw(x2, 600, 500))
    ref2 = jax.block_until_ready(_reference_resize(x2, 600, 500))
    assert out2.shape == (1, 2, 600, 500), out2.shape
    np.testing.assert_allclose(np.asarray(out2, dtype=np.float32), np.asarray(ref2),
                               rtol=1e-3, atol=1e-3)

    # ---- fast bf16 compute mode (review: recommended default on v5e) --------
    out2f = jax.block_until_ready(lanczos_resize_nchw(x2, 600, 500,
                                                      fast_compute=True))
    np.testing.assert_allclose(np.asarray(out2f, dtype=np.float32), np.asarray(ref2),
                               rtol=6e-2, atol=6e-2)

    # ---- host-side early-return paths (no kernel launch) --------------------
    assert random_downscale(x, sizes=(8, 16), side="longest") is x   # empty filter
    assert random_downscale(x, sizes=(32,), side="longest") is x     # scale == 1

    print("KERNEL_OK")
</pallas_src>

<mosaic_0001>
module attributes {stable_mosaic.version = 11 : i64} {
  func.func @kernel(%arg0: i32, %arg1: i32, %arg2: i32, %arg3: memref<1xi32, #tpu.memory_space<smem>>, %arg4: memref<1xi32, #tpu.memory_space<smem>>, %arg5: memref<1x32x32xf32, #tpu.memory_space<vmem>>, %arg6: memref<16x32xf32, #tpu.memory_space<vmem>>, %arg7: memref<32x128xf32, #tpu.memory_space<vmem>>, %arg8: memref<1x16x128xf32, #tpu.memory_space<vmem>>) attributes {dimension_semantics = [#tpu.dimension_semantics<parallel>, #tpu.dimension_semantics<arbitrary>, #tpu.dimension_semantics<arbitrary>], iteration_bounds = array<i64: 6, 1, 1>, scalar_prefetch = 2 : i64, scratch_operands = 0 : i64, tpu.core_type = #tpu.core_type<tc>, window_params = [{transform_indices = @transform_0, window_bounds = array<i64: 1, 32, 32>}, {transform_indices = @transform_1, window_bounds = array<i64: 16, 32>}, {transform_indices = @transform_2, window_bounds = array<i64: 32, 128>}, {transform_indices = @transform_3, window_bounds = array<i64: 1, 16, 128>}]} {
    %c0 = arith.constant 0 : index
    %c0_0 = arith.constant 0 : index
    %c0_1 = arith.constant 0 : index
    %0 = vector.load %arg5[%c0, %c0_0, %c0_1] : memref<1x32x32xf32, #tpu.memory_space<vmem>>, vector<1x32x32xf32>
    %1 = vector.shape_cast %0 : vector<1x32x32xf32> to vector<32x32xf32>
    %c0_2 = arith.constant 0 : index
    %c0_3 = arith.constant 0 : index
    %2 = vector.load %arg6[%c0_2, %c0_3] : memref<16x32xf32, #tpu.memory_space<vmem>>, vector<16x32xf32>
    %c0_4 = arith.constant 0 : index
    %c0_5 = arith.constant 0 : index
    %3 = vector.load %arg7[%c0_4, %c0_5] : memref<32x128xf32, #tpu.memory_space<vmem>>, vector<32x128xf32>
    %cst = arith.constant dense<0.000000e+00> : vector<16x32xf32>
    %4 = tpu.matmul %2, %1, %cst {dimension_numbers = #tpu.dot_dimension_numbers<[1], [0], [0], [1], [0, 0, 1, 1], [], []>} : vector<16x32xf32>, vector<32x32xf32>, vector<16x32xf32> -> vector<16x32xf32>
    %cst_6 = arith.constant dense<0.000000e+00> : vector<16x128xf32>
    %5 = tpu.matmul %4, %3, %cst_6 {dimension_numbers = #tpu.dot_dimension_numbers<[1], [0], [0], [1], [0, 0, 1, 1], [], []>} : vector<16x32xf32>, vector<32x128xf32>, vector<16x128xf32> -> vector<16x128xf32>
    %c0_7 = arith.constant 0 : index
    %c0_8 = arith.constant 0 : index
    %c0_9 = arith.constant 0 : index
    %6 = vector.load %arg8[%c0_7, %c0_8, %c0_9] : memref<1x16x128xf32, #tpu.memory_space<vmem>>, vector<1x16x128xf32>
    %7 = vector.shape_cast %6 : vector<1x16x128xf32> to vector<16x128xf32>
    %8 = vector.shape_cast %5 : vector<16x128xf32> to vector<1x16x128xf32>
    tpu.vector_store %arg8[%c0_7, %c0_8, %c0_9], %8 {strides = array<i32>} : memref<1x16x128xf32, #tpu.memory_space<vmem>>, vector<1x16x128xf32>,
    return
  }
  func.func @transform_0(%arg0: i32, %arg1: i32, %arg2: i32, %arg3: memref<1xi32, #tpu.memory_space<smem>>, %arg4: memref<1xi32, #tpu.memory_space<smem>>) -> (i32, i32, i32) {
    %c0_i32 = arith.constant 0 : i32
    %c0_i32_0 = arith.constant 0 : i32
    %c0_i32_1 = arith.constant 0 : i32
    return %arg0, %c0_i32, %c0_i32_0 : i32, i32, i32
  }
  func.func @transform_1(%arg0: i32, %arg1: i32, %arg2: i32, %arg3: memref<1xi32, #tpu.memory_space<smem>>, %arg4: memref<1xi32, #tpu.memory_space<smem>>) -> (i32, i32) {
    %c0_i32 = arith.constant 0 : i32
    %c0_i32_0 = arith.constant 0 : i32
    return %arg1, %c0_i32 : i32, i32
  }
  func.func @transform_2(%arg0: i32, %arg1: i32, %arg2: i32, %arg3: memref<1xi32, #tpu.memory_space<smem>>, %arg4: memref<1xi32, #tpu.memory_space<smem>>) -> (i32, i32) {
    %c0_i32 = arith.constant 0 : i32
    %c0_i32_0 = arith.constant 0 : i32
    return %c0_i32, %arg2 : i32, i32
  }
  func.func @transform_3(%arg0: i32, %arg1: i32, %arg2: i32, %arg3: memref<1xi32, #tpu.memory_space<smem>>, %arg4: memref<1xi32, #tpu.memory_space<smem>>) -> (i32, i32, i32) {
    %c0_i32 = arith.constant 0 : i32
    return %arg0, %arg1, %arg2 : i32, i32, i32
  }
}

</mosaic_0001>

<llo_original>
// kernel: tpu_custom_call.1
$region0: #{tpu_custom_call.1}
  #allocation0 [shape = 'u32[]', space=smem, size = 0x4, offset = 0x4, fixed_abs, tag = 'smem constant byte address 0x4 - core index']
  #allocation1 [shape = 'u32[144,128]{1,0:T(1,128)}', space=vmem, size = 0x12000, scoped, tag = 'internal scratch']
  #allocation2 [shape = 's32[1]{0}', space=sflag, size = 0x4, scoped, tag = 'scoped memory for tpu_custom_call.1']
  #allocation3 [shape = 's32[1]{0:T(128)S(6)}', space=smem, size = 0x200, scoped, tag = 'prefetched SMEM operand 0']
  #allocation4 [shape = 's32[1]{0:T(128)S(6)}', space=smem, size = 0x200, scoped, tag = 'prefetched SMEM operand 1']
  %s0 = inlined_call_operand.<no memory space> [shape: s32[1], index: 0, kind: input, shape index: {}]
  %s1 = inlined_call_operand.<no memory space> [shape: s32[1], index: 1, kind: input, shape index: {}]
  %s2 = inlined_call_operand.hbm [shape: f32[6,32,32], index: 2, kind: input, shape index: {}]
  %s3 = inlined_call_operand.hbm [shape: f32[16,32], index: 3, kind: input, shape index: {}]
  %s4 = inlined_call_operand.hbm [shape: f32[32,128], index: 4, kind: input, shape index: {}]
  %s5 = inlined_call_operand.hbm [shape: f32[6,16,128], index: 5, kind: output, shape index: {}]
  %s6 = sld [smem:[#allocation0]]
  $region57: #{tpu_custom_call.1} parent=0
    _
  %s8 = ssub.s32 1, %s6
  %s9 = scalar_select 0, %s8, %s6
  %10 = sst [smem:[#allocation3]] %s0
  %11 = sst [smem:[#allocation4]] %s1
  $region1: #{tpu_custom_call.1} parent=0
    #allocation5 [shape = 'u8[32768]{0}', space=vmem, size = 0x8000, scoped, tag = 'input window, operand 2']
    #allocation6 [shape = 's32[2]{0}', space=sflag, size = 0x8, scoped, tag = 'scoped memory for tpu_custom_call.1']
    #allocation7 [shape = 's32[2]{0}', space=sflag, size = 0x8, scoped, tag = 'scoped memory for tpu_custom_call.1']
    #allocation8 [shape = 'u8[8192]{0}', space=vmem, size = 0x2000, scoped, tag = 'input window, operand 3, single buffered']
    #allocation9 [shape = 's32[1]{0}', space=sflag, size = 0x4, scoped, tag = 'scoped memory for tpu_custom_call.1']
    #allocation10 [shape = 'u8[16384]{0}', space=vmem, size = 0x4000, scoped, tag = 'input window, operand 4, single buffered']
    #allocation11 [shape = 'u8[16384]{0}', space=vmem, size = 0x4000, scoped, tag = 'output window, operand 0']
    %12 = vsyncpa [#allocation6], 0
    %s13 = scalar_lea.sflag [#allocation6], 1
    %14 = vsyncpa %s13, 0
    %15 = vsyncpa [#allocation9], 0
    %16 = vsyncpa [#allocation7], 0
    %s17 = scalar_lea.sflag [#allocation7], 1
    %18 = vsyncpa %s17, 0
    loop: start=0, step=1, limit=8
    $region2: #{tpu_custom_call.1} parent=1 // loop_pre_header
      _
    $region3: #{tpu_custom_call.1} parent=1 // loop_header
      %s20 = sphi 0, %s24
      %p21 = scmp.ge.s32.totalorder %s20, 8
      %s27 = sphi 0, %s46
      %s28 = sphi 0, %s42
      %s29 = sphi 0, %s38
      %s30 = sphi 0, %s27
      %s31 = sphi 0, %s28
      %s32 = sphi 0, %s29
      %s33 = sphi 0, %s30
      %s34 = sphi 0, %s31
      %s35 = sphi 0, %s32
      %s49 = sphi 0, %s51
      %s52 = sphi 0, %s49
      %s53 = sphi 0, %s52
      %s69 = sphi 0, %s53
      %s75 = sphi 0, %s77
      %s78 = sphi 0, %s75
      %s79 = sphi 0, %s78
      %s95 = sphi 0, %s79
      %s101 = sphi 0, %s103
      %s104 = sphi 0, %s101
      %s105 = sphi 0, %s104
      %s121 = sphi 0, %s105
      %s131 = sphi 0, %s133
      %s134 = sphi 0, %s131
      %s135 = sphi 0, %s134
      %s151 = sphi 0, %s135
    $region4: #{tpu_custom_call.1} parent=1 // loop_header_branch
      %23 = sbr.rel (%p21) target = $region8
    $region5: #{tpu_custom_call.1} parent=1 // loop_body
      %s25 = ssub.s32 %s20, 1
      %s26 = ssub.s32 %s20, 2
      %s36 = sadd.s32 1, %s29
      %p37 = scmp.ge.s32.totalorder %s36, 1
      %s38 = scalar_select %p37, 0, %s36
      %s39 = sadd.s32 1, %s28
      %s40 = scalar_select %p37, %s39, %s28
      %p41 = scmp.ge.s32.totalorder %s40, 1
      %s42 = scalar_select %p41, 0, %s40
      %s43 = sadd.s32 1, %s27
      %s44 = scalar_select %p41, %s43, %s27
      %p45 = scmp.ge.s32.totalorder %s44, 6
      %s46 = scalar_select %p45, 0, %s44
      %s47 = ssub.s32 %s27, %s46
      %p48 = scmp.eq.s32.totalorder %s47, 0
      %s50 = sadd.s32 %s49, 1
      %s51 = scalar_select %p48, %s49, %s50
      %p54 = pneg %p48
      %p55 = scmp.eq.s32.totalorder %s20, 5
      %p56 = por %p54, %p55
      %p57 = scmp.ne.s32.totalorder %s49, %s52
      %p58 = scmp.eq.s32.totalorder %s20, 0
      %p59 = por %p57, %p58
      %p60 = scmp.ne.s32.totalorder %s49, %s52
      %p61 = scmp.eq.s32.totalorder %s25, 5
      %p62 = por %p60, %p61
      %p63 = scmp.ne.s32.totalorder %s52, %s53
      %p64 = scmp.eq.s32.totalorder %s25, 0
      %p65 = por %p63, %p64
      %p66 = scmp.ne.s32.totalorder %s52, %s53
      %p67 = scmp.eq.s32.totalorder %s26, 5
      %p68 = por %p66, %p67
      %p70 = scmp.ne.s32.totalorder %s53, %s69
      %p71 = scmp.eq.s32.totalorder %s26, 0
      %p72 = por %p70, %p71
      %s73 = ssub.s32 %s28, %s42
      %p74 = scmp.eq.s32.totalorder %s73, 0
      %s76 = sadd.s32 %s75, 1
      %s77 = scalar_select %p74, %s75, %s76
      %p80 = pneg %p74
      %p81 = scmp.eq.s32.totalorder %s20, 5
      %p82 = por %p80, %p81
      %p83 = scmp.ne.s32.totalorder %s75, %s78
      %p84 = scmp.eq.s32.totalorder %s20, 0
      %p85 = por %p83, %p84
      %p86 = scmp.ne.s32.totalorder %s75, %s78
      %p87 = scmp.eq.s32.totalorder %s25, 5
      %p88 = por %p86, %p87
      %p89 = scmp.ne.s32.totalorder %s78, %s79
      %p90 = scmp.eq.s32.totalorder %s25, 0
      %p91 = por %p89, %p90
      %p92 = scmp.ne.s32.totalorder %s78, %s79
      %p93 = scmp.eq.s32.totalorder %s26, 5
      %p94 = por %p92, %p93
      %p96 = scmp.ne.s32.totalorder %s79, %s95
      %p97 = scmp.eq.s32.totalorder %s26, 0
      %p98 = por %p96, %p97
      %s99 = ssub.s32 %s29, %s38
      %p100 = scmp.eq.s32.totalorder %s99, 0
      %s102 = sadd.s32 %s101, 1
      %s103 = scalar_select %p100, %s101, %s102
      %p106 = pneg %p100
      %p107 = scmp.eq.s32.totalorder %s20, 5
      %p108 = por %p106, %p107
      %p109 = scmp.ne.s32.totalorder %s101, %s104
      %p110 = scmp.eq.s32.totalorder %s20, 0
      %p111 = por %p109, %p110
      %p112 = scmp.ne.s32.totalorder %s101, %s104
      %p113 = scmp.eq.s32.totalorder %s25, 5
      %p114 = por %p112, %p113
      %p115 = scmp.ne.s32.totalorder %s104, %s105
      %p116 = scmp.eq.s32.totalorder %s25, 0
      %p117 = por %p115, %p116
      %p118 = scmp.ne.s32.totalorder %s104, %s105
      %p119 = scmp.eq.s32.totalorder %s26, 5
      %p120 = por %p118, %p119
      %p122 = scmp.ne.s32.totalorder %s105, %s121
      %p123 = scmp.eq.s32.totalorder %s26, 0
      %p124 = por %p122, %p123
      %s125 = ssub.s32 %s27, %s46
      %s126 = ssub.s32 %s28, %s42
      %s127 = sor.u32 %s125, %s126
      %s128 = ssub.s32 %s29, %s38
      %s129 = sor.u32 %s127, %s128
      %p130 = scmp.eq.s32.totalorder %s129, 0
      %s132 = sadd.s32 %s131, 1
      %s133 = scalar_select %p130, %s131, %s132
      %p136 = pneg %p130
      %p137 = scmp.eq.s32.totalorder %s20, 5
      %p138 = por %p136, %p137
      %p139 = scmp.ne.s32.totalorder %s131, %s134
      %p140 = scmp.eq.s32.totalorder %s20, 0
      %p141 = por %p139, %p140
      %p142 = scmp.ne.s32.totalorder %s131, %s134
      %p143 = scmp.eq.s32.totalorder %s25, 5
      %p144 = por %p142, %p143
      %p145 = scmp.ne.s32.totalorder %s134, %s135
      %p146 = scmp.eq.s32.totalorder %s25, 0
      %p147 = por %p145, %p146
      %p148 = scmp.ne.s32.totalorder %s134, %s135
      %p149 = scmp.eq.s32.totalorder %s26, 5
      %p150 = por %p148, %p149
      %p152 = scmp.ne.s32.totalorder %s135, %s151
      %p153 = scmp.eq.s32.totalorder %s26, 0
      %p154 = por %p152, %p153
      %p155 = scmp.le.s32.totalorder 1, %s20
      %p156 = scmp.lt.s32.totalorder %s20, 7
      %p157 = pnand %p155, %p156
      %p158 = pneg %p157
      // Predicated region
      $region9: #{tpu_custom_call.1} parent=5 // pred_check
        _
      $region10: #{tpu_custom_call.1} parent=5 // pred_check_branch
        %160 = sbr.rel (%p157) target = $region12
      $region11: #{tpu_custom_call.1} parent=5 // pred_region
        %s161 = ssub.s32 %s20, 1
        // Predicated region
        $region13: #{tpu_custom_call.1} parent=11 // pred_check
          %p162 = pneg %p91
        $region14: #{tpu_custom_call.1} parent=11 // pred_check_branch
          %164 = sbr.rel (%p162) target = $region16
        $region15: #{tpu_custom_call.1} parent=11 // pred_region
          %s165 = smul.u32 2, %s31
          %s167 = ssub.s32 256, 256
          %168 = vsyncadd [#allocation9], %s167
          %s169 = smul.addr %s165, 128
          %s170 = scalar_lea.hbm %s3, %s169
          %s171 = sshll.u32 [#allocation8], 4
          %s172 = int_to_ptr.vmem [resolvable:$true] %s171
          %177 = dma.hbm_to_vmem [thread:$0]  %s170, 256, %s172, [#allocation9], 128, 128, 8
        $region16: #{tpu_custom_call.1} parent=11 // pred_fallthru
          _
        // Predicated region
        $region17: #{tpu_custom_call.1} parent=11 // pred_check
          %p178 = pneg %p117
        $region18: #{tpu_custom_call.1} parent=11 // pred_check_branch
          %180 = sbr.rel (%p178) target = $region20
        $region19: #{tpu_custom_call.1} parent=11 // pred_region
          %s182 = ssub.s32 512, 512
          %183 = vsyncadd [#allocation9], %s182
          %s184 = smul.addr %s32, 128
          %s185 = scalar_lea.hbm %s4, %s184
          %s186 = sshll.u32 [#allocation10], 4
          %s187 = int_to_ptr.vmem [resolvable:$true] %s186
          %192 = dma.hbm_to_vmem [thread:$0]  %s185, 512, %s187, [#allocation9], 128, 128, 8
        $region20: #{tpu_custom_call.1} parent=11 // pred_fallthru
          _
      $region12: #{tpu_custom_call.1} parent=5 // pred_fallthru
        _
      %p193 = scmp.lt.s32.totalorder %s20, 6
      // Predicated region
      $region21: #{tpu_custom_call.1} parent=5 // pred_check
        %p194 = pneg %p193
      $region22: #{tpu_custom_call.1} parent=5 // pred_check_branch
        %196 = sbr.rel (%p194) target = $region24
      $region23: #{tpu_custom_call.1} parent=5 // pred_region
        // Predicated region
        $region25: #{tpu_custom_call.1} parent=23 // pred_check
          %p197 = pneg %p59
        $region26: #{tpu_custom_call.1} parent=23 // pred_check_branch
          %199 = sbr.rel (%p197) target = $region28
        $region27: #{tpu_custom_call.1} parent=23 // pred_region
          %s200 = sand.u32 %s49, 1
          %s201 = scalar_lea.sflag [#allocation6], %s200
          %s202 = sand.u32 %s49, 1
          %s203 = smul.addr %s202, 32
          %s204 = scalar_lea.vmem [#allocation5], %s203
          %s206 = ssub.s32 512, 512
          %207 = vsyncadd %s201, %s206
          %s208 = smul.addr %s27, 4
          %s209 = smul.addr %s208, 128
          %s210 = scalar_lea.hbm %s2, %s209
          %s211 = sshll.u32 %s204, 4
          %s212 = int_to_ptr.vmem [resolvable:$true] %s211
          %217 = dma.hbm_to_vmem [thread:$0]  %s210, 512, %s212, %s201, 128, 128, 8
        $region28: #{tpu_custom_call.1} parent=23 // pred_fallthru
          _
      $region24: #{tpu_custom_call.1} parent=5 // pred_fallthru
        _
      %p218 = scmp.le.s32.totalorder 1, %s20
      %p219 = scmp.lt.s32.totalorder %s20, 7
      %p220 = pnand %p218, %p219
      %p221 = pneg %p220
      // Predicated region
      $region29: #{tpu_custom_call.1} parent=5 // pred_check
        _
      $region30: #{tpu_custom_call.1} parent=5 // pred_check_branch
        %223 = sbr.rel (%p220) target = $region32
      $region31: #{tpu_custom_call.1} parent=5 // pred_region
        %s224 = ssub.s32 %s20, 1
        %s225 = sand.u32 %s52, 1
        %s226 = scalar_lea.sflag [#allocation6], %s225
        %s227 = sand.u32 %s52, 1
        %s228 = smul.addr %s227, 32
        %s229 = scalar_lea.vmem [#allocation5], %s228
        // Predicated region
        $region33: #{tpu_custom_call.1} parent=31 // pred_check
          %p230 = pneg %p65
        $region34: #{tpu_custom_call.1} parent=31 // pred_check_branch
          %232 = sbr.rel (%p230) target = $region36
        $region35: #{tpu_custom_call.1} parent=31 // pred_region
          %233 = dma.done %s226, 512
        $region36: #{tpu_custom_call.1} parent=31 // pred_fallthru
          _
        // Predicated region
        $region37: #{tpu_custom_call.1} parent=31 // pred_check
          %p234 = pneg %p91
        $region38: #{tpu_custom_call.1} parent=31 // pred_check_branch
          %236 = sbr.rel (%p234) target = $region40
        $region39: #{tpu_custom_call.1} parent=31 // pred_region
          %237 = dma.done [#allocation9], 256
        $region40: #{tpu_custom_call.1} parent=31 // pred_fallthru
          _
        // Predicated region
        $region41: #{tpu_custom_call.1} parent=31 // pred_check
          %p238 = pneg %p117
        $region42: #{tpu_custom_call.1} parent=31 // pred_check_branch
          %240 = sbr.rel (%p238) target = $region44
        $region43: #{tpu_custom_call.1} parent=31 // pred_region
          %241 = dma.done [#allocation9], 512
        $region44: #{tpu_custom_call.1} parent=31 // pred_fallthru
          _
        %s242 = sand.u32 %s52, 1
        %s243 = scalar_lea.sflag [#allocation6], %s242
        %s244 = sand.u32 %s52, 1
        %s245 = smul.addr %s244, 32
        %s246 = scalar_lea.vmem [#allocation5], %s245
        %p247 = pneg %p65
        %p248 = pneg %p62
        %p249 = pneg %p91
        %p250 = pneg %p88
        %p251 = pneg %p117
        %p252 = pneg %p114
        %p253 = pneg %p147
        %p254 = pneg %p144
        %s255 = sand.u32 %s134, 1
        %s256 = scalar_lea.sflag [#allocation7], %s255
        %s257 = sand.u32 %s134, 1
        %s258 = smul.addr %s257, 16
        %s259 = scalar_lea.vmem [#allocation11], %s258
        %s260 = smul.u32 2, %s31
        %s261 = smul.u32 2, %s31
        %v262 = vld [vmem:[%s229] sm:$0xff]
        %v263 = vld [vmem:[%s229 + $0x8] sm:$0xff]
        %v264 = vld [vmem:[%s229 + $0x10] sm:$0xff]
        %v265 = vld [vmem:[%s229 + $0x18] sm:$0xff]
        %v266 = vld [vmem:[#allocation8] sm:$0xff]
        %v267 = vld [vmem:[#allocation8 + $0x8] sm:$0xff]
        %v268 = vld [vmem:[#allocation10] sm:$0xff]
        %v269 = vld [vmem:[#allocation10 + $0x8] sm:$0xff]
        %v270 = vld [vmem:[#allocation10 + $0x10] sm:$0xff]
        %v271 = vld [vmem:[#allocation10 + $0x18] sm:$0xff]
        %vm272 = vcmask 261120
        %v274 = vsel %vm272, %v266, 0
        %v277 = vsel %vm272, %v267, 0
        %279 = vmatprep.subr.mxu0 0.0
        %280 = vmatpush1.msra.mxu0 0.0
        %281 = vmatprep.subr.mxu0 0.0
        %282 = vmatpush1.msra.mxu0 0.0
        %283 = vmatprep.subr.mxu0 0.0
        %284 = vmatpush1.msra.mxu0 0.0
        %285 = vmatprep.subr.mxu0 0.0
        %286 = vmatpush1.msra.mxu0 0.0
        %287 = vmatprep.subr.mxu0 0.0
        %288 = vmatpush1.msra.mxu0 0.0
        %289 = vmatprep.subr.mxu0 0.0
        %290 = vmatpush1.msra.mxu0 0.0
        %291 = vmatprep.subr.mxu0 0.0
        %292 = vmatpush1.msra.mxu0 0.0
        %293 = vmatprep.subr.mxu0 0.0
        %294 = vmatpush1.msra.mxu0 0.0
        %295 = vmatprep.subr.mxu0 0.0
        %296 = vmatpush1.msra.mxu0 0.0
        %297 = vmatprep.subr.mxu0 0.0
        %298 = vmatpush1.msra.mxu0 0.0
        %299 = vmatprep.subr.mxu0 0.0
        %300 = vmatpush1.msra.mxu0 0.0
        %301 = vmatprep.subr.mxu0 0.0
        %302 = vmatpush1.msra.mxu0 0.0
        %303 = vmatprep.subr.mxu0 0.0
        %304 = vmatpush1.msra.mxu0 %v265
        %305 = vmatprep.subr.mxu0 0.0
        %306 = vmatpush1.msra.mxu0 %v264
        %307 = vmatprep.subr.mxu0 0.0
        %308 = vmatpush1.msra.mxu0 %v263
        %309 = vmatprep.subr.mxu0 0.0
        %310 = vmatpush1.msra.mxu0 %v262
        %311 = vmatprep.subr.mxu0 0.0
        %312 = vmatpush2.msra.mxu0 0.0
        %313 = vmatprep.subr.mxu0 0.0
        %314 = vmatpush2.msra.mxu0 0.0
        %315 = vmatprep.subr.mxu0 0.0
        %316 = vmatpush2.msra.mxu0 0.0
        %317 = vmatprep.subr.mxu0 0.0
        %318 = vmatpush2.msra.mxu0 0.0
        %319 = vmatprep.subr.mxu0 0.0
        %320 = vmatpush2.msra.mxu0 0.0
        %321 = vmatprep.subr.mxu0 0.0
        %322 = vmatpush2.msra.mxu0 0.0
        %323 = vmatprep.subr.mxu0 0.0
        %324 = vmatpush2.msra.mxu0 0.0
        %325 = vmatprep.subr.mxu0 0.0
        %326 = vmatpush2.msra.mxu0 0.0
        %327 = vmatprep.subr.mxu0 0.0
        %328 = vmatpush2.msra.mxu0 0.0
        %329 = vmatprep.subr.mxu0 0.0
        %330 = vmatpush2.msra.mxu0 0.0
        %331 = vmatprep.subr.mxu0 0.0
        %332 = vmatpush2.msra.mxu0 0.0
        %333 = vmatprep.subr.mxu0 0.0
        %334 = vmatpush2.msra.mxu0 0.0
        %335 = vmatprep.subr.mxu0 0.0
        %336 = vmatpush2.msra.mxu0 0.0
        %337 = vmatprep.subr.mxu0 0.0
        %338 = vmatpush2.msra.mxu0 0.0
        %339 = vmatprep.subr.mxu0 0.0
        %340 = vmatpush2.msra.mxu0 0.0
        %341 = vmatprep.subr.mxu0 0.0
        %342 = vmatpush2.msra.mxu0 0.0
        %343 = vmatprep.mubr.f32.mxu0 0.0
        %344 = vmatmul.mubr.f32.gmra.mxu0 %v274
        %v345 = vpop.f32.mrf.mxu0
        %v346 = vadd.f32 0.0, %v345
        %v347 = vpop.f32.mrf.mxu0
        %348 = vmatprep.mubr.f32.mxu0 0.0
        %349 = vmatmul.mubr.f32.gmra.mxu0 %v277
        %v350 = vpop.f32.mrf.mxu0
        %v351 = vadd.f32 0.0, %v350
        %v352 = vpop.f32.mrf.mxu0
        %353 = vdwg.mxu0
        %v355 = vsel %vm272, %v346, 0
        %v358 = vsel %vm272, %v351, 0
        %360 = vmatprep.subr.mxu0 0.0
        %361 = vmatpush1.msra.mxu0 0.0
        %362 = vmatprep.subr.mxu0 0.0
        %363 = vmatpush1.msra.mxu0 0.0
        %364 = vmatprep.subr.mxu0 0.0
        %365 = vmatpush1.msra.mxu0 0.0
        %366 = vmatprep.subr.mxu0 0.0
        %367 = vmatpush1.msra.mxu0 0.0
        %368 = vmatprep.subr.mxu0 0.0
        %369 = vmatpush1.msra.mxu0 0.0
        %370 = vmatprep.subr.mxu0 0.0
        %371 = vmatpush1.msra.mxu0 0.0
        %372 = vmatprep.subr.mxu0 0.0
        %373 = vmatpush1.msra.mxu0 0.0
        %374 = vmatprep.subr.mxu0 0.0
        %375 = vmatpush1.msra.mxu0 0.0
        %376 = vmatprep.subr.mxu0 0.0
        %377 = vmatpush1.msra.mxu0 0.0
        %378 = vmatprep.subr.mxu0 0.0
        %379 = vmatpush1.msra.mxu0 0.0
        %380 = vmatprep.subr.mxu0 0.0
        %381 = vmatpush1.msra.mxu0 0.0
        %382 = vmatprep.subr.mxu0 0.0
        %383 = vmatpush1.msra.mxu0 0.0
        %384 = vmatprep.subr.mxu0 0.0
        %385 = vmatpush1.msra.mxu0 %v271
        %386 = vmatprep.subr.mxu0 0.0
        %387 = vmatpush1.msra.mxu0 %v270
        %388 = vmatprep.subr.mxu0 0.0
        %389 = vmatpush1.msra.mxu0 %v269
        %390 = vmatprep.subr.mxu0 0.0
        %391 = vmatpush1.msra.mxu0 %v268
        %392 = vmatprep.subr.mxu0 0.0
        %393 = vmatpush2.msra.mxu0 0.0
        %394 = vmatprep.subr.mxu0 0.0
        %395 = vmatpush2.msra.mxu0 0.0
        %396 = vmatprep.subr.mxu0 0.0
        %397 = vmatpush2.msra.mxu0 0.0
        %398 = vmatprep.subr.mxu0 0.0
        %399 = vmatpush2.msra.mxu0 0.0
        %400 = vmatprep.subr.mxu0 0.0
        %401 = vmatpush2.msra.mxu0 0.0
        %402 = vmatprep.subr.mxu0 0.0
        %403 = vmatpush2.msra.mxu0 0.0
        %404 = vmatprep.subr.mxu0 0.0
        %405 = vmatpush2.msra.mxu0 0.0
        %406 = vmatprep.subr.mxu0 0.0
        %407 = vmatpush2.msra.mxu0 0.0
        %408 = vmatprep.subr.mxu0 0.0
        %409 = vmatpush2.msra.mxu0 0.0
        %410 = vmatprep.subr.mxu0 0.0
        %411 = vmatpush2.msra.mxu0 0.0
        %412 = vmatprep.subr.mxu0 0.0
        %413 = vmatpush2.msra.mxu0 0.0
        %414 = vmatprep.subr.mxu0 0.0
        %415 = vmatpush2.msra.mxu0 0.0
        %416 = vmatprep.subr.mxu0 0.0
        %417 = vmatpush2.msra.mxu0 0.0
        %418 = vmatprep.subr.mxu0 0.0
        %419 = vmatpush2.msra.mxu0 0.0
        %420 = vmatprep.subr.mxu0 0.0
        %421 = vmatpush2.msra.mxu0 0.0
        %422 = vmatprep.subr.mxu0 0.0
        %423 = vmatpush2.msra.mxu0 0.0
        %424 = vmatprep.mubr.f32.mxu0 0.0
        %425 = vmatmul.mubr.f32.gmra.mxu0 %v355
        %v426 = vpop.f32.mrf.mxu0
        %v427 = vadd.f32 0.0, %v426
        %v428 = vpop.f32.mrf.mxu0
        %429 = vmatprep.mubr.f32.mxu0 0.0
        %430 = vmatmul.mubr.f32.gmra.mxu0 %v358
        %v431 = vpop.f32.mrf.mxu0
        %v432 = vadd.f32 0.0, %v431
        %v433 = vpop.f32.mrf.mxu0
        %434 = vdwg.mxu0
        %435 = vst [vmem:[%s259] sm:$0xff] %v427
        %436 = vst [vmem:[%s259 + $0x8] sm:$0xff] %v432
        %s437 = sand.u32 %s134, 1
        %s438 = scalar_lea.sflag [#allocation7], %s437
        %s439 = sand.u32 %s134, 1
        %s440 = smul.addr %s439, 16
        %s441 = scalar_lea.vmem [#allocation11], %s440
        // Predicated region
        $region45: #{tpu_custom_call.1} parent=31 // pred_check
          %p442 = pneg %p144
        $region46: #{tpu_custom_call.1} parent=31 // pred_check_branch
          %444 = sbr.rel (%p442) target = $region48
        $region47: #{tpu_custom_call.1} parent=31 // pred_region
          %s445 = smul.u32 2, %s31
          %s447 = ssub.s32 256, 256
          %448 = vsyncadd %s438, %s447
          %s449 = sadd.s32 %s32, %s445
          %s450 = smul.addr %s30, 2
          %s451 = sadd.s32 %s449, %s450
          %s452 = smul.addr %s451, 128
          %s453 = scalar_lea.hbm %s5, %s452
          %s454 = sshll.u32 %s441, 4
          %s455 = int_to_ptr.vmem [resolvable:$true] %s454
          %460 = dma.vmem_to_hbm [thread:$0]  %s455, 256, %s453, %s438, 128, 128, 8
        $region48: #{tpu_custom_call.1} parent=31 // pred_fallthru
          _
      $region32: #{tpu_custom_call.1} parent=5 // pred_fallthru
        _
      %p461 = scmp.le.s32.totalorder 2, %s20
      // Predicated region
      $region49: #{tpu_custom_call.1} parent=5 // pred_check
        %p462 = pneg %p461
      $region50: #{tpu_custom_call.1} parent=5 // pred_check_branch
        %464 = sbr.rel (%p462) target = $region52
      $region51: #{tpu_custom_call.1} parent=5 // pred_region
        %s465 = ssub.s32 %s20, 2
        // Predicated region
        $region53: #{tpu_custom_call.1} parent=51 // pred_check
          %p466 = pneg %p150
        $region54: #{tpu_custom_call.1} parent=51 // pred_check_branch
          %468 = sbr.rel (%p466) target = $region56
        $region55: #{tpu_custom_call.1} parent=51 // pred_region
          %s469 = sand.u32 %s135, 1
          %s470 = scalar_lea.sflag [#allocation7], %s469
          %s471 = sand.u32 %s135, 1
          %s472 = smul.addr %s471, 16
          %s473 = scalar_lea.vmem [#allocation11], %s472
          %474 = dma.done %s470, 256
        $region56: #{tpu_custom_call.1} parent=51 // pred_fallthru
          _
      $region52: #{tpu_custom_call.1} parent=5 // pred_fallthru
        _
    $region6: #{tpu_custom_call.1} parent=1 // loop_footer
      %s24 = sadd.s32 1, %s20
    $region7: #{tpu_custom_call.1} parent=1 // loop_footer_branch
      %19 = sbr.rel target = $region3
    $region8: #{tpu_custom_call.1} parent=1 // loop_exit
      _
    %475 = vsyncpa [#allocation6], 1
    %s476 = scalar_lea.sflag [#allocation6], 1
    %477 = vsyncpa %s476, 1
    %478 = vsyncpa [#allocation9], 1
    %479 = vsyncpa [#allocation7], 1
    %s480 = scalar_lea.sflag [#allocation7], 1
    %481 = vsyncpa %s480, 1

</llo_original>
